<compile_context>
chip_gen: v7x
topology: tpu7x:2x2x1
jax: 0.10.0
libtpu: 0.0.40
codegen_flags: <defaults>
</compile_context>

<pallas_src>
import functools

import jax
import jax.numpy as jnp
from jax.experimental import pallas as pl
from jax.experimental.pallas import tpu as pltpu


def _hypernym_kernel(idx_ref, w_ref, emb_ref, out_ref, gbuf, sem):
    """One grid step = one batch tile of TB rows.

    idx_ref : SMEM (B_pad * H,) int32     -- scalar-prefetched hypernym ids
    w_ref   : VMEM (TB, H, 1)  float32    -- per-hypernym weights for this tile
    emb_ref : HBM  (V, D_pad)             -- embedding table (pl.ANY, manual DMA)
    out_ref : VMEM (TB, D_pad) float32    -- weighted sums for this tile
    gbuf    : VMEM (2, TB, H, D_pad)      -- double-buffered gather scratch
    sem     : DMA semaphores (2,)
    """
    i = pl.program_id(0)
    tb, h, _ = w_ref.shape
    v = emb_ref.shape[0]
    slot = i % 2
    base = i * (tb * h)

    # 1) Issue every row gather of this tile back-to-back; the independent
    #    copies overlap each other inside the DMA engine.
    @pl.loop(0, tb)
    def _issue_rows(bb):
        row_base = base + bb * h

        @pl.loop(0, h)
        def _issue(hh):
            # Clamp: DMA out-of-bounds is unchecked on TPU.
            tok = jnp.clip(idx_ref[row_base + hh], 0, v - 1)
            pltpu.make_async_copy(
                emb_ref.at[pl.ds(tok, 1), :],
                gbuf.at[slot, bb, pl.ds(hh, 1), :],
                sem.at[slot],
            ).start()

    # 2) Wait for all of them (equal-sized copies on one semaphore per slot).
    @pl.loop(0, tb)
    def _wait_rows(bb):
        @pl.loop(0, h)
        def _wait(hh):
            pltpu.make_async_copy(
                emb_ref.at[pl.ds(0, 1), :],
                gbuf.at[slot, bb, pl.ds(hh, 1), :],
                sem.at[slot],
            ).wait()

    # 3) Vectorized weighted reduction over the hypernym axis:
    #    (TB, H, 1) * (TB, H, Dpad) --sum over H (sublane reduce)--> (TB, Dpad).
    g = gbuf[slot].astype(jnp.float32)
    out_ref[...] = jnp.sum(w_ref[...] * g, axis=1).astype(out_ref.dtype)


@functools.partial(jax.jit, static_argnames=("tb",))
def hypernym_forward(indices, weights, embedding_table, *, tb=8):
    """indices: (B, H) int; weights: (B, H) float; embedding_table: (V, D) float."""
    B, H = indices.shape
    V, D = embedding_table.shape

    B_pad = pl.cdiv(B, tb) * tb
    D_pad = pl.cdiv(D, 128) * 128

    # Padded batch rows gather table row 0 with weight 0 and are sliced off below.
    idx_p = jnp.zeros((B_pad, H), jnp.int32).at[:B].set(indices.astype(jnp.int32))
    w_p = jnp.zeros((B_pad, H, 1), jnp.float32).at[:B, :, 0].set(
        weights.astype(jnp.float32))

    emb_p = embedding_table
    if D_pad != D:
        # Lane-dense rows -> unmasked vector stores.  (A production table would be
        # stored pre-padded, and optionally in bf16 to halve HBM gather traffic.)
        emb_p = jnp.pad(embedding_table, ((0, 0), (0, D_pad - D)))

    out = pl.pallas_call(
        _hypernym_kernel,
        out_shape=jax.ShapeDtypeStruct((B_pad, D_pad), jnp.float32),
        grid_spec=pltpu.PrefetchScalarGridSpec(
            num_scalar_prefetch=1,                              # flattened indices
            grid=(B_pad // tb,),
            in_specs=[
                pl.BlockSpec((tb, H, 1), lambda i, idx: (i, 0, 0)),  # weights tile
                pl.BlockSpec(memory_space=pl.ANY),                   # table in HBM
            ],
            out_specs=pl.BlockSpec((tb, D_pad), lambda i, idx: (i, 0)),
            scratch_shapes=[
                pltpu.VMEM((2, tb, H, D_pad), emb_p.dtype),
                pltpu.SemaphoreType.DMA((2,)),
            ],
        ),
        compiler_params=pltpu.CompilerParams(
            dimension_semantics=("parallel",),      # disjoint output tiles per step
            vmem_limit_bytes=32 * 1024 * 1024,      # fits v5e/v6e/v7x budgets
        ),
    )(idx_p.reshape(-1), w_p, emb_p)

    return out[:B, :D]


if __name__ == "__main__":
    # Small, deterministic synthetic setup.
    B = 2    # batch size
    H = 8    # hypernyms per example
    V = 64   # vocabulary size
    D = 32   # embedding_dim

    key = jax.random.PRNGKey(0)
    k_emb, k_idx, k_w = jax.random.split(key, 3)

    embedding_table = jax.random.normal(k_emb, (V, D), dtype=jnp.float32)
    indices = jax.random.randint(k_idx, (B, H), 0, V, dtype=jnp.int32)
    weights = jax.random.uniform(k_w, (B, H), dtype=jnp.float32)

    out = jax.block_until_ready(hypernym_forward(indices, weights, embedding_table))

    # Pure-JAX reference of the PyTorch forward pass.
    ref = jnp.sum(weights[:, :, None] * embedding_table[indices], axis=1)
    assert out.shape == (B, D)
    assert jnp.allclose(out, ref, rtol=1e-5, atol=1e-5), "mismatch vs reference"

    print("KERNEL_OK")
</pallas_src>

<mosaic_0001>
module attributes {stable_mosaic.version = 11 : i64} {
  func.func @_hypernym_kernel(%arg0: i32, %arg1: memref<64xi32, #tpu.memory_space<smem>>, %arg2: memref<8x8x1xf32, #tpu.memory_space<vmem>>, %arg3: memref<64x128xf32, #tpu.memory_space<any>>, %arg4: memref<8x128xf32, #tpu.memory_space<vmem>>, %arg5: memref<2x8x8x128xf32, #tpu.memory_space<vmem>>, %arg6: memref<2x!tpu.dma_semaphore, #tpu.memory_space<semaphore_mem>>) attributes {dimension_semantics = [#tpu.dimension_semantics<parallel>], iteration_bounds = array<i64: 1>, scalar_prefetch = 1 : i64, scratch_operands = 2 : i64, tpu.core_type = #tpu.core_type<tc>, window_params = [{transform_indices = @transform_0, window_bounds = array<i64: 8, 8, 1>}, {}, {transform_indices = @transform_2, window_bounds = array<i64: 8, 128>}]} {
    %c2_i32 = arith.constant 2 : i32
    %c0_i32 = arith.constant 0 : i32
    %0 = arith.cmpi eq, %c2_i32, %c0_i32 : i32
    %c1_i32 = arith.constant 1 : i32
    %1 = arith.select %0, %c1_i32, %c2_i32 : i32
    %2 = arith.remsi %arg0, %1 : i32
    %c0_i32_0 = arith.constant 0 : i32
    %3 = arith.cmpi ne, %2, %c0_i32_0 : i32
    %c0_i32_1 = arith.constant 0 : i32
    %4 = arith.cmpi slt, %2, %c0_i32_1 : i32
    %c0_i32_2 = arith.constant 0 : i32
    %5 = arith.cmpi slt, %1, %c0_i32_2 : i32
    %6 = arith.xori %4, %5 : i1
    %7 = arith.andi %6, %3 : i1
    %8 = arith.addi %2, %1 : i32
    %9 = arith.select %7, %8, %2 : i32
    %c64_i32 = arith.constant 64 : i32
    %10 = arith.muli %arg0, %c64_i32 : i32
    %c0_i32_3 = arith.constant 0 : i32
    %c8_i32 = arith.constant 8 : i32
    %11 = arith.addi %c0_i32_3, %c8_i32 : i32
    %c1_i32_4 = arith.constant 1 : i32
    scf.for %arg7 = %c0_i32_3 to %11 step %c1_i32_4  : i32 {
      %c1_i32_17 = arith.constant 1 : i32
      %21 = arith.muli %arg7, %c1_i32_17 : i32
      %c0_i32_18 = arith.constant 0 : i32
      %22 = arith.addi %c0_i32_18, %21 : i32
      %c8_i32_19 = arith.constant 8 : i32
      %23 = arith.muli %22, %c8_i32_19 : i32
      %24 = arith.addi %10, %23 : i32
      %c0_i32_20 = arith.constant 0 : i32
      %c8_i32_21 = arith.constant 8 : i32
      %25 = arith.addi %c0_i32_20, %c8_i32_21 : i32
      %c1_i32_22 = arith.constant 1 : i32
      scf.for %arg8 = %c0_i32_20 to %25 step %c1_i32_22  : i32 {
        %c1_i32_24 = arith.constant 1 : i32
        %26 = arith.muli %arg8, %c1_i32_24 : i32
        %c0_i32_25 = arith.constant 0 : i32
        %27 = arith.addi %c0_i32_25, %26 : i32
        %28 = arith.addi %24, %27 : i32
        %29 = arith.index_cast %28 : i32 to index
        %30 = memref.load %arg1[%29] : memref<64xi32, #tpu.memory_space<smem>>
        %c0_i32_26 = arith.constant 0 : i32
        %c63_i32 = arith.constant 63 : i32
        %31 = arith.maxsi %c0_i32_26, %30 : i32
        %32 = arith.minsi %c63_i32, %31 : i32
        %c0_i32_27 = arith.constant 0 : i32
        %33 = tpu.memref_slice %arg3[%32, %c0_i32_27] : memref<64x128xf32, #tpu.memory_space<any>> -> memref<1x128xf32, #tpu.memory_space<any>>
        %c0_i32_28 = arith.constant 0 : i32
        %34 = tpu.memref_slice %arg5[%9, %22, %27, %c0_i32_28] : memref<2x8x8x128xf32, #tpu.memory_space<vmem>> -> memref<1x1x1x128xf32, #tpu.memory_space<vmem>>
        %35 = tpu.memref_squeeze %34 : memref<1x1x1x128xf32, #tpu.memory_space<vmem>> -> memref<1x128xf32, #tpu.memory_space<vmem>>
        %36 = tpu.memref_slice %arg6[%9] : memref<2x!tpu.dma_semaphore, #tpu.memory_space<semaphore_mem>> -> memref<1x!tpu.dma_semaphore, #tpu.memory_space<semaphore_mem>>
        %37 = tpu.memref_squeeze %36 : memref<1x!tpu.dma_semaphore, #tpu.memory_space<semaphore_mem>> -> memref<!tpu.dma_semaphore, #tpu.memory_space<semaphore_mem>>
        tpu.enqueue_dma source(%33 : memref<1x128xf32, #tpu.memory_space<any>>) target(%35 : memref<1x128xf32, #tpu.memory_space<vmem>>) target_semaphore(%37 : memref<!tpu.dma_semaphore, #tpu.memory_space<semaphore_mem>>)
      }
      %c8_i32_23 = arith.constant 8 : i32
    }
    %c8_i32_5 = arith.constant 8 : i32
    %c0_i32_6 = arith.constant 0 : i32
    %c8_i32_7 = arith.constant 8 : i32
    %12 = arith.addi %c0_i32_6, %c8_i32_7 : i32
    %c1_i32_8 = arith.constant 1 : i32
    scf.for %arg7 = %c0_i32_6 to %12 step %c1_i32_8  : i32 {
      %c1_i32_17 = arith.constant 1 : i32
      %21 = arith.muli %arg7, %c1_i32_17 : i32
      %c0_i32_18 = arith.constant 0 : i32
      %22 = arith.addi %c0_i32_18, %21 : i32
      %c0_i32_19 = arith.constant 0 : i32
      %c8_i32_20 = arith.constant 8 : i32
      %23 = arith.addi %c0_i32_19, %c8_i32_20 : i32
      %c1_i32_21 = arith.constant 1 : i32
      scf.for %arg8 = %c0_i32_19 to %23 step %c1_i32_21  : i32 {
        %c1_i32_23 = arith.constant 1 : i32
        %24 = arith.muli %arg8, %c1_i32_23 : i32
        %c0_i32_24 = arith.constant 0 : i32
        %25 = arith.addi %c0_i32_24, %24 : i32
        %c0_i32_25 = arith.constant 0 : i32
        %c0_i32_26 = arith.constant 0 : i32
        %26 = tpu.memref_slice %arg3[%c0_i32_25, %c0_i32_26] : memref<64x128xf32, #tpu.memory_space<any>> -> memref<1x128xf32, #tpu.memory_space<any>>
        %c0_i32_27 = arith.constant 0 : i32
        %27 = tpu.memref_slice %arg5[%9, %22, %25, %c0_i32_27] : memref<2x8x8x128xf32, #tpu.memory_space<vmem>> -> memref<1x1x1x128xf32, #tpu.memory_space<vmem>>
        %28 = tpu.memref_squeeze %27 : memref<1x1x1x128xf32, #tpu.memory_space<vmem>> -> memref<1x128xf32, #tpu.memory_space<vmem>>
        %29 = tpu.memref_slice %arg6[%9] : memref<2x!tpu.dma_semaphore, #tpu.memory_space<semaphore_mem>> -> memref<1x!tpu.dma_semaphore, #tpu.memory_space<semaphore_mem>>
        %30 = tpu.memref_squeeze %29 : memref<1x!tpu.dma_semaphore, #tpu.memory_space<semaphore_mem>> -> memref<!tpu.dma_semaphore, #tpu.memory_space<semaphore_mem>>
        tpu.wait_dma2 semaphore(%30 : memref<!tpu.dma_semaphore, #tpu.memory_space<semaphore_mem>>) src(%26 : memref<1x128xf32, #tpu.memory_space<any>>) dst(%28 : memref<1x128xf32, #tpu.memory_space<vmem>>)
      }
      %c8_i32_22 = arith.constant 8 : i32
    }
    %c8_i32_9 = arith.constant 8 : i32
    %13 = arith.index_cast %9 : i32 to index
    %c0 = arith.constant 0 : index
    %c0_10 = arith.constant 0 : index
    %c0_11 = arith.constant 0 : index
    %14 = vector.load %arg5[%13, %c0, %c0_10, %c0_11] : memref<2x8x8x128xf32, #tpu.memory_space<vmem>>, vector<1x8x8x128xf32>
    %15 = vector.shape_cast %14 : vector<1x8x8x128xf32> to vector<8x8x128xf32>
    %c0_12 = arith.constant 0 : index
    %c0_13 = arith.constant 0 : index
    %c0_14 = arith.constant 0 : index
    %16 = vector.load %arg2[%c0_12, %c0_13, %c0_14] : memref<8x8x1xf32, #tpu.memory_space<vmem>>, vector<8x8x1xf32>
    %17 = vector.broadcast %16 : vector<8x8x1xf32> to vector<8x8x128xf32>
    %18 = arith.mulf %17, %15 : vector<8x8x128xf32>
    %cst = arith.constant dense<0.000000e+00> : vector<8x128xf32>
    %19 = vector.multi_reduction <add>, %18, %cst [1] : vector<8x8x128xf32> to vector<8x128xf32>
    %c0_15 = arith.constant 0 : index
    %c0_16 = arith.constant 0 : index
    %20 = vector.load %arg4[%c0_15, %c0_16] : memref<8x128xf32, #tpu.memory_space<vmem>>, vector<8x128xf32>
    tpu.vector_store %arg4[%c0_15, %c0_16], %19 {strides = array<i32>} : memref<8x128xf32, #tpu.memory_space<vmem>>, vector<8x128xf32>,
    return
  }
  func.func @transform_0(%arg0: i32, %arg1: memref<64xi32, #tpu.memory_space<smem>>) -> (i32, i32, i32) {
    %c0_i32 = arith.constant 0 : i32
    %c0_i32_0 = arith.constant 0 : i32
    %c0_i32_1 = arith.constant 0 : i32
    return %arg0, %c0_i32, %c0_i32_0 : i32, i32, i32
  }
  func.func @transform_2(%arg0: i32, %arg1: memref<64xi32, #tpu.memory_space<smem>>) -> (i32, i32) {
    %c0_i32 = arith.constant 0 : i32
    %c0_i32_0 = arith.constant 0 : i32
    return %arg0, %c0_i32 : i32, i32
  }
}

</mosaic_0001>

<llo_original>
// kernel: hypernym_forward.1
$region0: #{hypernym_forward.1}
  #allocation0 [shape = 'u32[]', space=smem, size = 0x4, offset = 0x4, fixed_abs, tag = 'smem constant byte address 0x4 - core index']
  #allocation1 [shape = 'u32[144,128]{1,0:T(1,128)}', space=vmem, size = 0x12000, scoped, tag = 'internal scratch']
  #allocation2 [shape = 'f32[2,8,8,128]{3,2,1,0:T(8,128)}', space=vmem, size = 0x10000, scoped, tag = 'scratch operand']
  #allocation3 [shape = 's32[2]{0}', space=sflag, size = 0x8, scoped, tag = 'scratch operand']
  #allocation4 [shape = 's32[1]{0}', space=sflag, size = 0x4, scoped, tag = 'scoped memory for hypernym_forward.1']
  #allocation5 [shape = 'u8[512]{0}', space=smem, size = 0x200, scoped, tag = 'prefetched SMEM operand 0']
  #allocation6 [shape = 's32[]', space=sflag, size = 0x4, offset = 0, fixed_abs, tag = 'sflag constant byte address 0x0 - dummy sync flag']
  %s0 = inlined_call_operand.vmem [shape: s32[64], index: 0, kind: input, shape index: {}]
  %s1 = inlined_call_operand.vmem [shape: f32[8,8,1], index: 1, kind: input, shape index: {}]
  %s2 = inlined_call_operand.vmem [shape: f32[64,128], index: 2, kind: input, shape index: {}]
  %s3 = inlined_call_operand.vmem [shape: f32[8,128], index: 3, kind: output, shape index: {}]
  %s4 = sld [smem:[#allocation0]]
  $region72: #{hypernym_forward.1} parent=0
    _
  %s6 = ssub.s32 1, %s4
  %s7 = scalar_select 0, %s6, %s4
  %s8 = sshll.u32 %s0, 4
  %s9 = int_to_ptr.vmem [resolvable:$true] %s8
  %11 = dma.vmem_to_smem %s9, 16, [#allocation5], [#allocation4]
  %12 = dma.done [#allocation4], 16
  %13 = sfence
  // Predicated region
  $region2: #{hypernym_forward.1} parent=0 // pred_check
    _
  $region3: #{hypernym_forward.1} parent=0 // pred_check_branch
    %15 = sbr.rel (0) target = $region5
  $region4: #{hypernym_forward.1} parent=0 // pred_region
    _
  $region5: #{hypernym_forward.1} parent=0 // pred_fallthru
    _
  %s16 = ssub.s32 0, 0
  %s17 = ssub.s32 0, 0
  %p18 = scmp.ne.s32.totalorder 0, 0
  %p19 = scmp.lt.s32.totalorder 0, 0
  %p20 = pnand %p19, %p18
  %p21 = pneg %p20
  %s22 = sadd.s32 0, 2
  %s23 = scalar_select %p21, %s22, 0
  %s24 = smul.u32 0, 64
  loop: start=0, step=1, limit=8
  $region6: #{hypernym_forward.1} parent=0 // loop_pre_header
    _
  $region7: #{hypernym_forward.1} parent=0 // loop_header
    %s26 = sphi 0, %s30
    %p27 = scmp.ge.s32.totalorder %s26, 8
  $region8: #{hypernym_forward.1} parent=0 // loop_header_branch
    %29 = sbr.rel (%p27) target = $region12
  $region9: #{hypernym_forward.1} parent=0 // loop_body
    %s31 = smul.u32 %s26, 8
    %s32 = sadd.s32 %s24, %s31
    loop: start=0, step=1, limit=8
    $region13: #{hypernym_forward.1} parent=9 // loop_pre_header
      _
    $region14: #{hypernym_forward.1} parent=9 // loop_header
      %s34 = sphi 0, %s38
      %p35 = scmp.ge.s32.totalorder %s34, 8
    $region15: #{hypernym_forward.1} parent=9 // loop_header_branch
      %37 = sbr.rel (%p35) target = $region19
    $region16: #{hypernym_forward.1} parent=9 // loop_body
      %s39 = sadd.s32 %s32, %s34
      %s40 = sld [smem:[#allocation5 + %s39]]
      %p41 = scmp.gt.s32.totalorder %s40, 0
      %s42 = scalar_select %p41, %s40, 0
      %p43 = scmp.lt.s32.totalorder %s42, 63
      %s44 = scalar_select %p43, %s42, 63
      %s45 = scalar_lea.vmem %s2, %s44
      %s46 = sadd.s32 %s34, %s31
      %s47 = smul.u32 %s23, 64
      %s48 = sadd.s32 %s46, %s47
      %s49 = scalar_lea.vmem [#allocation2], %s48
      %s50 = scalar_lea.sflag [#allocation3], %s23
      %p52 = scmp.lt.u32.totalorder 1, 8
      %p53 = pneg %p52
      // Predicated region
      $region20: #{hypernym_forward.1} parent=16 // pred_check
        _
      $region21: #{hypernym_forward.1} parent=16 // pred_check_branch
        %55 = sbr.rel (%p52) target = $region23
      $region22: #{hypernym_forward.1} parent=16 // pred_region
        %s70 = sand.u32 1, 7
        %p71 = scmp.eq.s32.totalorder %s70, 0
        %p72 = pneg %p71
        // Predicated region
        $region35: #{hypernym_forward.1} parent=22 // pred_check
          _
        $region36: #{hypernym_forward.1} parent=22 // pred_check_branch
          %74 = sbr.rel (%p71) target = $region38
        $region37: #{hypernym_forward.1} parent=22 // pred_region
          %s75 = sand.u32 1, 7
          %s76 = ssub.s32 1, %s75
          %s77 = scalar_lea.vmem %s45, %s76
          %s78 = ssub.s32 1, %s75
          %s79 = scalar_lea.vmem %s49, %s78 [#allocation2]
          %s80 = sshllo.u32 0, %s75
          loop: start=0, step=1, limit=1
          $region39: #{hypernym_forward.1} parent=37 // loop_pre_header
            _
          $region40: #{hypernym_forward.1} parent=37 // loop_header
            %s82 = sphi 0, %s86
            %p83 = scmp.ge.s32.totalorder %s82, 1
            %s87 = sphi %s77, %s77
            %s88 = sphi %s79, %s79
          $region41: #{hypernym_forward.1} parent=37 // loop_header_branch
            %85 = sbr.rel (%p83) target = $region45
          $region42: #{hypernym_forward.1} parent=37 // loop_body
            %v89 = vld [vmem:[%s87] sm:%s80]
            %90 = vst [vmem:[%s88] sm:%s80] %v89
          $region43: #{hypernym_forward.1} parent=37 // loop_footer
            %s86 = sadd.s32 1, %s82
          $region44: #{hypernym_forward.1} parent=37 // loop_footer_branch
            %81 = sbr.rel target = $region40
          $region45: #{hypernym_forward.1} parent=37 // loop_exit
            _
        $region38: #{hypernym_forward.1} parent=22 // pred_fallthru
          _
      $region23: #{hypernym_forward.1} parent=16 // pred_fallthru
        _
      // Predicated region
      $region24: #{hypernym_forward.1} parent=16 // pred_check
        %p56 = pneg %p52
      $region25: #{hypernym_forward.1} parent=16 // pred_check_branch
        %58 = sbr.rel (%p56) target = $region27
      $region26: #{hypernym_forward.1} parent=16 // pred_region
        %s59 = sshllo.u32 0, 1
        loop: start=0, step=1, limit=1
        $region28: #{hypernym_forward.1} parent=26 // loop_pre_header
          _
        $region29: #{hypernym_forward.1} parent=26 // loop_header
          %s61 = sphi 0, %s65
          %p62 = scmp.ge.s32.totalorder %s61, 1
          %s66 = sphi %s45, %s45
          %s67 = sphi %s49, %s49
        $region30: #{hypernym_forward.1} parent=26 // loop_header_branch
          %64 = sbr.rel (%p62) target = $region34
        $region31: #{hypernym_forward.1} parent=26 // loop_body
          %v68 = vld [vmem:[%s66] sm:%s59]
          %69 = vst [vmem:[%s67] sm:%s59] %v68
        $region32: #{hypernym_forward.1} parent=26 // loop_footer
          %s65 = sadd.s32 1, %s61
        $region33: #{hypernym_forward.1} parent=26 // loop_footer_branch
          %60 = sbr.rel target = $region29
        $region34: #{hypernym_forward.1} parent=26 // loop_exit
          _
      $region27: #{hypernym_forward.1} parent=16 // pred_fallthru
        _
      // Predicated region
      $region46: #{hypernym_forward.1} parent=16 // pred_check
        _
      $region47: #{hypernym_forward.1} parent=16 // pred_check_branch
        %93 = sbr.rel (0) target = $region49
      $region48: #{hypernym_forward.1} parent=16 // pred_region
        %94 = vsyncadd %s50, 16
      $region49: #{hypernym_forward.1} parent=16 // pred_fallthru
        _
    $region17: #{hypernym_forward.1} parent=9 // loop_footer
      %s38 = sadd.s32 1, %s34
    $region18: #{hypernym_forward.1} parent=9 // loop_footer_branch
      %33 = sbr.rel target = $region14
    $region19: #{hypernym_forward.1} parent=9 // loop_exit
      _
  $region10: #{hypernym_forward.1} parent=0 // loop_footer
    %s30 = sadd.s32 1, %s26
  $region11: #{hypernym_forward.1} parent=0 // loop_footer_branch
    %25 = sbr.rel target = $region7
  $region12: #{hypernym_forward.1} parent=0 // loop_exit
    _
  loop: start=0, step=1, limit=8
  $region50: #{hypernym_forward.1} parent=0 // loop_pre_header
    _
  $region51: #{hypernym_forward.1} parent=0 // loop_header
    %s96 = sphi 0, %s100
    %p97 = scmp.ge.s32.totalorder %s96, 8
  $region52: #{hypernym_forward.1} parent=0 // loop_header_branch
    %99 = sbr.rel (%p97) target = $region56
  $region53: #{hypernym_forward.1} parent=0 // loop_body
    loop: start=0, step=1, limit=8
    $region57: #{hypernym_forward.1} parent=53 // loop_pre_header
      _
    $region58: #{hypernym_forward.1} parent=53 // loop_header
      %s102 = sphi 0, %s106
      %p103 = scmp.ge.s32.totalorder %s102, 8
    $region59: #{hypernym_forward.1} parent=53 // loop_header_branch
      %105 = sbr.rel (%p103) target = $region63
    $region60: #{hypernym_forward.1} parent=53 // loop_body
      %s107 = scalar_lea.sflag [#allocation3], %s23
      %s108 = smul.u32 1, 1
      %s109 = sshll.u32 %s108, 4
      %110 = dma.done %s107, %s109
    $region61: #{hypernym_forward.1} parent=53 // loop_footer
      %s106 = sadd.s32 1, %s102
    $region62: #{hypernym_forward.1} parent=53 // loop_footer_branch
      %101 = sbr.rel target = $region58
    $region63: #{hypernym_forward.1} parent=53 // loop_exit
      _
  $region54: #{hypernym_forward.1} parent=0 // loop_footer
    %s100 = sadd.s32 1, %s96
  $region55: #{hypernym_forward.1} parent=0 // loop_footer_branch
    %95 = sbr.rel target = $region51
  $region56: #{hypernym_forward.1} parent=0 // loop_exit
    _
  %s111 = smul.u32 %s23, 64
  %s112 = scalar_lea.vmem [#allocation2], %s111
  %v113 = vld [vmem:[%s112] sm:$0xff]
  %v114 = vld [vmem:[%s112 + $0x8] sm:$0xff]
  %v115 = vld [vmem:[%s112 + $0x10] sm:$0xff]
  %v116 = vld [vmem:[%s112 + $0x18] sm:$0xff]
  %v117 = vld [vmem:[%s112 + $0x20] sm:$0xff]
  %v118 = vld [vmem:[%s112 + $0x28] sm:$0xff]
  %v119 = vld [vmem:[%s112 + $0x30] sm:$0xff]
  %v120 = vld [vmem:[%s112 + $0x38] sm:$0xff]
  %v121 = vld [vmem:[%s1] sm:$0xff]
  %v122 = vld [vmem:[%s1 + $0x8] sm:$0xff]
  %v123 = vld [vmem:[%s1 + $0x10] sm:$0xff]
  %v124 = vld [vmem:[%s1 + $0x18] sm:$0xff]
  %v125 = vld [vmem:[%s1 + $0x20] sm:$0xff]
  %v126 = vld [vmem:[%s1 + $0x28] sm:$0xff]
  %v127 = vld [vmem:[%s1 + $0x30] sm:$0xff]
  %v128 = vld [vmem:[%s1 + $0x38] sm:$0xff]
  %130 = vset.pattern.permute.xlu0 0
  %131 = vperm.xlu0 %130, %v121
  %v132 = vpop.permute.xlu0 %131
  %135 = vset.pattern.permute.xlu0 0
  %136 = vperm.xlu0 %135, %v122
  %v137 = vpop.permute.xlu0 %136
  %140 = vset.pattern.permute.xlu0 0
  %141 = vperm.xlu0 %140, %v123
  %v142 = vpop.permute.xlu0 %141
  %145 = vset.pattern.permute.xlu0 0
  %146 = vperm.xlu0 %145, %v124
  %v147 = vpop.permute.xlu0 %146
  %150 = vset.pattern.permute.xlu0 0
  %151 = vperm.xlu0 %150, %v125
  %v152 = vpop.permute.xlu0 %151
  %155 = vset.pattern.permute.xlu0 0
  %156 = vperm.xlu0 %155, %v126
  %v157 = vpop.permute.xlu0 %156
  %160 = vset.pattern.permute.xlu0 0
  %161 = vperm.xlu0 %160, %v127
  %v162 = vpop.permute.xlu0 %161
  %165 = vset.pattern.permute.xlu0 0
  %166 = vperm.xlu0 %165, %v128
  %v167 = vpop.permute.xlu0 %166
  %v169 = vmul.f32 %v132, %v113
  %v170 = vmul.f32 %v137, %v114
  %v171 = vmul.f32 %v142, %v115
  %v172 = vmul.f32 %v147, %v116
  %v173 = vmul.f32 %v152, %v117
  %v174 = vmul.f32 %v157, %v118
  %v175 = vmul.f32 %v162, %v119
  %v176 = vmul.f32 %v167, %v120
  %v177 = vrot.slane %v169, 4
  %v178 = vadd.f32 %v169, %v177
  %v179 = vrot.slane %v178, 2
  %v180 = vadd.f32 %v178, %v179
  %v181 = vrot.slane %v180, 1
  %v182 = vadd.f32 %v180, %v181
  %v183 = vrot.slane %v170, 4
  %v184 = vadd.f32 %v170, %v183
  %v185 = vrot.slane %v184, 2
  %v186 = vadd.f32 %v184, %v185
  %v187 = vrot.slane %v186, 1
  %v188 = vadd.f32 %v186, %v187
  %v189 = vrot.slane %v171, 4
  %v190 = vadd.f32 %v171, %v189
  %v191 = vrot.slane %v190, 2
  %v192 = vadd.f32 %v190, %v191
  %v193 = vrot.slane %v192, 1
  %v194 = vadd.f32 %v192, %v193
  %v195 = vrot.slane %v172, 4
  %v196 = vadd.f32 %v172, %v195
  %v197 = vrot.slane %v196, 2
  %v198 = vadd.f32 %v196, %v197
  %v199 = vrot.slane %v198, 1
  %v200 = vadd.f32 %v198, %v199
  %v201 = vrot.slane %v173, 4
  %v202 = vadd.f32 %v173, %v201
  %v203 = vrot.slane %v202, 2
  %v204 = vadd.f32 %v202, %v203
  %v205 = vrot.slane %v204, 1
  %v206 = vadd.f32 %v204, %v205
  %v207 = vrot.slane %v174, 4
  %v208 = vadd.f32 %v174, %v207
  %v209 = vrot.slane %v208, 2
  %v210 = vadd.f32 %v208, %v209
  %v211 = vrot.slane %v210, 1
  %v212 = vadd.f32 %v210, %v211
  %v213 = vrot.slane %v175, 4
  %v214 = vadd.f32 %v175, %v213
  %v215 = vrot.slane %v214, 2
  %v216 = vadd.f32 %v214, %v215
  %v217 = vrot.slane %v216, 1
  %v218 = vadd.f32 %v216, %v217
  %v219 = vrot.slane %v176, 4
  %v220 = vadd.f32 %v176, %v219
  %v221 = vrot.slane %v220, 2
  %v222 = vadd.f32 %v220, %v221
  %v223 = vrot.slane %v222, 1
  %v224 = vadd.f32 %v222, %v223
  %vm233 = vcmask 1041409
  %v234 = vsel %vm233, %v188, %v182
  %vm235 = vcmask 1042434
  %v236 = vsel %vm235, %v194, %v234
  %vm237 = vcmask 1043459
  %v238 = vsel %vm237, %v200, %v236
  %vm239 = vcmask 1044484
  %v240 = vsel %vm239, %v206, %v238
  %vm241 = vcmask 1045509
  %v242 = vsel %vm241, %v212, %v240
  %vm243 = vcmask 1046534
  %v244 = vsel %vm243, %v218, %v242
  %vm245 = vcmask 1047559
  %v246 = vsel %vm245, %v224, %v244
  %248 = vst [vmem:[%s3] sm:$0xff] %v246
  // Predicated region
  $region64: #{hypernym_forward.1} parent=0 // pred_check
    _
  $region65: #{hypernym_forward.1} parent=0 // pred_check_branch
    %250 = sbr.rel (0) target = $region67
  $region66: #{hypernym_forward.1} parent=0 // pred_region
    _
  $region67: #{hypernym_forward.1} parent=0 // pred_fallthru
    _
  // Predicated region
  $region68: #{hypernym_forward.1} parent=0 // pred_check
    _
  $region69: #{hypernym_forward.1} parent=0 // pred_check_branch
    %252 = sbr.rel (0) target = $region71
  $region70: #{hypernym_forward.1} parent=0 // pred_region
    _
  $region71: #{hypernym_forward.1} parent=0 // pred_fallthru
    _
  %253 = vsyncmov [#allocation3]
  %s254 = vpop.sfrf %253
  %p255 = scmp.eq.s32.totalorder %s254, 0
  %p256 = pneg %p255
  %258 = shalt.err (%p256)
  %s259 = scalar_lea.sflag [#allocation3], 1
  %260 = vsyncmov %s259
  %s261 = vpop.sfrf %260
  %p262 = scmp.eq.s32.totalorder %s261, 0
  %p263 = pneg %p262
  %265 = shalt.err (%p263)

</llo_original>
